<compile_context>
chip_gen: v6e
topology: v6e:2x2x1
jax: 0.10.0
libtpu: 0.0.40
codegen_flags: <defaults>
</compile_context>

<pallas_src>
import functools

import jax
import jax.numpy as jnp
from jax.experimental import pallas as pl
from jax.experimental.pallas import tpu as pltpu


def _round_up(x: int, m: int) -> int:
    return (x + m - 1) // m * m


def _mean_pool_kernel(eps, h_ref, m_ref, o_ref, msum_ref):
    # h_ref:    (1, S_TILE, H_pad)  hidden-state tile, original dtype
    # m_ref:    (1, 1, S_TILE)      float32 mask tile (lane-dense)
    # o_ref:    (1, 1, H_pad)       f32 output block, resident across s
    # msum_ref: (1, 1)              f32 VMEM scratch for the mask count
    s = pl.program_id(1)

    @pl.when(s == 0)
    def _init():
        o_ref[...] = jnp.zeros_like(o_ref)
        msum_ref[...] = jnp.zeros_like(msum_ref)

    h = h_ref[0]                     # (S_TILE, H_pad)
    m = m_ref[0]                     # (1, S_TILE) float32
    # Masked multiply + reduce-over-sequence in one MXU contraction,
    # accumulated in f32 regardless of the input dtype.
    partial = jnp.dot(m.astype(h.dtype), h,
                      preferred_element_type=jnp.float32)        # (1, H_pad)
    o_ref[...] += partial[None]                                  # (1, 1, H_pad)
    msum_ref[...] += jnp.sum(m, axis=-1, keepdims=True)          # (1, 1)

    @pl.when(s == pl.num_programs(1) - 1)
    def _finalize():
        # torch.clamp(sum_mask, min=eps); exact divide keeps parity with torch.
        denom = jnp.maximum(msum_ref[...], eps)                  # (1, 1)
        o_ref[...] = o_ref[...] / denom


def mean_pooling(last_hidden_state: jax.Array,
                 attention_mask: jax.Array,
                 eps: float = 1e-6) -> jax.Array:
    """Pallas implementation of MeanPooling.forward.

    last_hidden_state: (B, S, H) float array (== outputs[0] in the torch code)
    attention_mask:    (B, S)    int/float mask
    returns:           (B, H)    float32 mean-pooled embeddings
    """
    B, S, H = last_hidden_state.shape

    # Lane-dense hidden/output dimension.
    H_pad = _round_up(H, 128)

    # Sequence tile: multiple of 128 (mask lane dim), sized so the hidden block
    # is ~4 MiB (x2 double-buffered -> well under the 16/32 MiB scoped VMEM
    # defaults on v5e/v6e/v7x, no vmem_limit override needed).
    itemsize = jnp.dtype(last_hidden_state.dtype).itemsize
    s_tile = max(128, ((4 * 1024 * 1024) // max(1, H_pad * itemsize)) // 128 * 128)
    s_tile = min(s_tile, _round_up(S, 128))
    S_pad = _round_up(S, s_tile)
    num_s = S_pad // s_tile

    h = last_hidden_state                      # keep original dtype (no f32 upcast)
    if S_pad != S or H_pad != H:
        h = jnp.pad(h, ((0, 0), (0, S_pad - S), (0, H_pad - H)))

    m = attention_mask.astype(jnp.float32)
    if S_pad != S:
        m = jnp.pad(m, ((0, 0), (0, S_pad - S)))  # zero padding -> no contribution
    m = m.reshape(B, 1, S_pad)                    # lane-dense mask

    kernel = functools.partial(_mean_pool_kernel, eps)

    out = pl.pallas_call(
        kernel,
        out_shape=jax.ShapeDtypeStruct((B, 1, H_pad), jnp.float32),
        grid_spec=pltpu.PrefetchScalarGridSpec(
            num_scalar_prefetch=0,
            grid=(B, num_s),
            in_specs=[
                pl.BlockSpec((1, s_tile, H_pad), lambda b, s: (b, s, 0)),
                pl.BlockSpec((1, 1, s_tile), lambda b, s: (b, 0, s)),
            ],
            out_specs=pl.BlockSpec((1, 1, H_pad), lambda b, s: (b, 0, 0)),
            scratch_shapes=[pltpu.VMEM((1, 1), jnp.float32)],
        ),
        compiler_params=pltpu.CompilerParams(
            dimension_semantics=("parallel", "arbitrary")),
    )(h, m)

    return out[:, 0, :H]


def _reference(last_hidden_state, attention_mask, eps=1e-6):
    # Pure-JAX reference mirroring the PyTorch forward.
    m = attention_mask.astype(jnp.float32)[..., None]
    m = jnp.broadcast_to(m, last_hidden_state.shape)
    sum_emb = jnp.sum(last_hidden_state.astype(jnp.float32) * m, axis=1)
    sum_mask = jnp.maximum(jnp.sum(m, axis=1), eps)   # == torch.clamp(min=eps)
    return sum_emb / sum_mask


if __name__ == "__main__":
    key = jax.random.PRNGKey(0)
    k1, k2 = jax.random.split(key)

    B, S, H = 2, 8, 32
    last_hidden_state = jax.random.normal(k1, (B, S, H), dtype=jnp.float32)
    # Integer 0/1 attention mask (like transformer attention masks).
    attention_mask = (jax.random.uniform(k2, (B, S)) > 0.3).astype(jnp.int32)

    # f32 path
    out = mean_pooling(last_hidden_state, attention_mask)
    out = jax.block_until_ready(out)
    ref = _reference(last_hidden_state, attention_mask)
    assert out.shape == (B, H)
    assert jnp.allclose(out, ref, atol=1e-5, rtol=1e-5), "mismatch vs reference (f32)"

    # bf16 path: input stays bf16 in HBM, accumulation is f32 inside the kernel.
    lhs_bf16 = last_hidden_state.astype(jnp.bfloat16)
    out_bf = jax.block_until_ready(mean_pooling(lhs_bf16, attention_mask))
    ref_bf = _reference(lhs_bf16.astype(jnp.float32), attention_mask)
    assert jnp.allclose(out_bf, ref_bf, atol=5e-2, rtol=5e-2), "mismatch vs reference (bf16)"

    print("KERNEL_OK")
</pallas_src>

<mosaic_0001>
module attributes {stable_mosaic.version = 11 : i64} {
  func.func @_mean_pool_kernel(%arg0: i32, %arg1: i32, %arg2: memref<1x128x128xf32, #tpu.memory_space<vmem>>, %arg3: memref<1x1x128xf32, #tpu.memory_space<vmem>>, %arg4: memref<1x1x128xf32, #tpu.memory_space<vmem>>, %arg5: memref<1x1xf32, #tpu.memory_space<vmem>>) attributes {dimension_semantics = [#tpu.dimension_semantics<parallel>, #tpu.dimension_semantics<arbitrary>], iteration_bounds = array<i64: 2, 1>, scalar_prefetch = 0 : i64, scratch_operands = 1 : i64, tpu.core_type = #tpu.core_type<tc>, window_params = [{transform_indices = @transform_0, window_bounds = array<i64: 1, 128, 128>}, {transform_indices = @transform_1, window_bounds = array<i64: 1, 1, 128>}, {transform_indices = @transform_2, window_bounds = array<i64: 1, 1, 128>}]} {
    %c0_i32 = arith.constant 0 : i32
    %0 = arith.cmpi eq, %arg1, %c0_i32 : i32
    %1 = arith.extui %0 : i1 to i32
    %c0_i32_0 = arith.constant 0 : i32
    %2 = arith.cmpi ne, %1, %c0_i32_0 : i32
    scf.if %2 {
      %cst_19 = arith.constant 0.000000e+00 : f32
      %20 = vector.broadcast %cst_19 : f32 to vector<1x1x128xf32>
      %c0_20 = arith.constant 0 : index
      %c0_21 = arith.constant 0 : index
      %c0_22 = arith.constant 0 : index
      %21 = vector.load %arg4[%c0_20, %c0_21, %c0_22] : memref<1x1x128xf32, #tpu.memory_space<vmem>>, vector<1x1x128xf32>
      tpu.vector_store %arg4[%c0_20, %c0_21, %c0_22], %20 {strides = array<i32>} : memref<1x1x128xf32, #tpu.memory_space<vmem>>, vector<1x1x128xf32>,
      %cst_23 = arith.constant 0.000000e+00 : f32
      %22 = vector.broadcast %cst_23 : f32 to vector<1x1xf32>
      %c0_24 = arith.constant 0 : index
      %c0_25 = arith.constant 0 : index
      %23 = vector.load %arg5[%c0_24, %c0_25] : memref<1x1xf32, #tpu.memory_space<vmem>>, vector<1x1xf32>
      tpu.vector_store %arg5[%c0_24, %c0_25], %22 {strides = array<i32>} : memref<1x1xf32, #tpu.memory_space<vmem>>, vector<1x1xf32>,
    } else {
    }
    %c0 = arith.constant 0 : index
    %c0_1 = arith.constant 0 : index
    %c0_2 = arith.constant 0 : index
    %3 = vector.load %arg2[%c0, %c0_1, %c0_2] : memref<1x128x128xf32, #tpu.memory_space<vmem>>, vector<1x128x128xf32>
    %4 = vector.shape_cast %3 : vector<1x128x128xf32> to vector<128x128xf32>
    %c0_3 = arith.constant 0 : index
    %c0_4 = arith.constant 0 : index
    %c0_5 = arith.constant 0 : index
    %5 = vector.load %arg3[%c0_3, %c0_4, %c0_5] : memref<1x1x128xf32, #tpu.memory_space<vmem>>, vector<1x1x128xf32>
    %6 = vector.shape_cast %5 : vector<1x1x128xf32> to vector<1x128xf32>
    %cst = arith.constant dense<0.000000e+00> : vector<1x128xf32>
    %7 = tpu.matmul %6, %4, %cst {dimension_numbers = #tpu.dot_dimension_numbers<[1], [0], [0], [1], [0, 0, 1, 1], [], []>} : vector<1x128xf32>, vector<128x128xf32>, vector<1x128xf32> -> vector<1x128xf32>
    %c0_6 = arith.constant 0 : index
    %c0_7 = arith.constant 0 : index
    %c0_8 = arith.constant 0 : index
    %8 = vector.load %arg4[%c0_6, %c0_7, %c0_8] : memref<1x1x128xf32, #tpu.memory_space<vmem>>, vector<1x1x128xf32>
    %9 = vector.shape_cast %7 : vector<1x128xf32> to vector<1x1x128xf32>
    %10 = arith.addf %8, %9 : vector<1x1x128xf32>
    %c0_9 = arith.constant 0 : index
    %c0_10 = arith.constant 0 : index
    %c0_11 = arith.constant 0 : index
    %11 = vector.load %arg4[%c0_9, %c0_10, %c0_11] : memref<1x1x128xf32, #tpu.memory_space<vmem>>, vector<1x1x128xf32>
    tpu.vector_store %arg4[%c0_9, %c0_10, %c0_11], %10 {strides = array<i32>} : memref<1x1x128xf32, #tpu.memory_space<vmem>>, vector<1x1x128xf32>,
    %c0_12 = arith.constant 0 : index
    %c0_13 = arith.constant 0 : index
    %12 = vector.load %arg5[%c0_12, %c0_13] : memref<1x1xf32, #tpu.memory_space<vmem>>, vector<1x1xf32>
    %cst_14 = arith.constant dense<0.000000e+00> : vector<1xf32>
    %13 = vector.multi_reduction <add>, %6, %cst_14 [1] : vector<1x128xf32> to vector<1xf32>
    %14 = vector.shape_cast %13 : vector<1xf32> to vector<1x1xf32>
    %15 = arith.addf %12, %14 : vector<1x1xf32>
    %c0_15 = arith.constant 0 : index
    %c0_16 = arith.constant 0 : index
    %16 = vector.load %arg5[%c0_15, %c0_16] : memref<1x1xf32, #tpu.memory_space<vmem>>, vector<1x1xf32>
    tpu.vector_store %arg5[%c0_15, %c0_16], %15 {strides = array<i32>} : memref<1x1xf32, #tpu.memory_space<vmem>>, vector<1x1xf32>,
    %c0_i32_17 = arith.constant 0 : i32
    %17 = arith.cmpi eq, %arg1, %c0_i32_17 : i32
    %18 = arith.extui %17 : i1 to i32
    %c0_i32_18 = arith.constant 0 : i32
    %19 = arith.cmpi ne, %18, %c0_i32_18 : i32
    scf.if %19 {
      %c0_19 = arith.constant 0 : index
      %c0_20 = arith.constant 0 : index
      %20 = vector.load %arg5[%c0_19, %c0_20] : memref<1x1xf32, #tpu.memory_space<vmem>>, vector<1x1xf32>
      %cst_21 = arith.constant 9.99999997E-7 : f32
      %21 = vector.broadcast %cst_21 : f32 to vector<1x1xf32>
      %22 = arith.maximumf %20, %21 : vector<1x1xf32>
      %c0_22 = arith.constant 0 : index
      %c0_23 = arith.constant 0 : index
      %c0_24 = arith.constant 0 : index
      %23 = vector.load %arg4[%c0_22, %c0_23, %c0_24] : memref<1x1x128xf32, #tpu.memory_space<vmem>>, vector<1x1x128xf32>
      %24 = vector.shape_cast %22 : vector<1x1xf32> to vector<1x1x1xf32>
      %25 = vector.broadcast %24 : vector<1x1x1xf32> to vector<1x1x128xf32>
      %26 = arith.divf %23, %25 : vector<1x1x128xf32>
      %c0_25 = arith.constant 0 : index
      %c0_26 = arith.constant 0 : index
      %c0_27 = arith.constant 0 : index
      %27 = vector.load %arg4[%c0_25, %c0_26, %c0_27] : memref<1x1x128xf32, #tpu.memory_space<vmem>>, vector<1x1x128xf32>
      tpu.vector_store %arg4[%c0_25, %c0_26, %c0_27], %26 {strides = array<i32>} : memref<1x1x128xf32, #tpu.memory_space<vmem>>, vector<1x1x128xf32>,
    } else {
    }
    return
  }
  func.func @transform_0(%arg0: i32, %arg1: i32) -> (i32, i32, i32) {
    %c0_i32 = arith.constant 0 : i32
    %c0_i32_0 = arith.constant 0 : i32
    return %arg0, %arg1, %c0_i32 : i32, i32, i32
  }
  func.func @transform_1(%arg0: i32, %arg1: i32) -> (i32, i32, i32) {
    %c0_i32 = arith.constant 0 : i32
    %c0_i32_0 = arith.constant 0 : i32
    return %arg0, %c0_i32, %arg1 : i32, i32, i32
  }
  func.func @transform_2(%arg0: i32, %arg1: i32) -> (i32, i32, i32) {
    %c0_i32 = arith.constant 0 : i32
    %c0_i32_0 = arith.constant 0 : i32
    %c0_i32_1 = arith.constant 0 : i32
    return %arg0, %c0_i32, %c0_i32_0 : i32, i32, i32
  }
}

</mosaic_0001>

<llo_original>
// kernel: tpu_custom_call.1
$region0: #{tpu_custom_call.1}
  #allocation0 [shape = 'u32[]', space=smem, size = 0x4, offset = 0x4, fixed_abs, tag = 'smem constant byte address 0x4 - core index']
  #allocation1 [shape = 'u32[144,128]{1,0:T(1,128)}', space=vmem, size = 0x12000, scoped, tag = 'internal scratch']
  #allocation2 [shape = 'f32[1,1]{1,0:T(1,128)}', space=vmem, size = 0x200, scoped, tag = 'scratch operand']
  %s0 = inlined_call_operand.hbm [shape: f32[2,128,128], index: 0, kind: input, shape index: {}]
  %s1 = inlined_call_operand.hbm [shape: f32[2,1,128], index: 1, kind: input, shape index: {}]
  %s2 = inlined_call_operand.hbm [shape: f32[2,1,128], index: 2, kind: output, shape index: {}]
  %s3 = sld [smem:[#allocation0]]
  $region57: #{tpu_custom_call.1} parent=0
    _
  %s5 = ssub.s32 1, %s3
  %s6 = scalar_select 0, %s5, %s3
  $region1: #{tpu_custom_call.1} parent=0
    #allocation3 [shape = 'u8[131072]{0}', space=vmem, size = 0x20000, scoped, tag = 'input window, operand 0']
    #allocation4 [shape = 's32[2]{0}', space=sflag, size = 0x8, scoped, tag = 'scoped memory for tpu_custom_call.1']
    #allocation5 [shape = 's32[2]{0}', space=sflag, size = 0x8, scoped, tag = 'scoped memory for tpu_custom_call.1']
    #allocation6 [shape = 'u8[1024]{0}', space=vmem, size = 0x400, scoped, tag = 'input window, operand 1']
    #allocation7 [shape = 's32[2]{0}', space=sflag, size = 0x8, scoped, tag = 'scoped memory for tpu_custom_call.1']
    #allocation8 [shape = 'u8[1024]{0}', space=vmem, size = 0x400, scoped, tag = 'output window, operand 0']
    %7 = vsyncpa [#allocation4], 0
    %s8 = scalar_lea.sflag [#allocation4], 1
    %9 = vsyncpa %s8, 0
    %10 = vsyncpa [#allocation7], 0
    %s11 = scalar_lea.sflag [#allocation7], 1
    %12 = vsyncpa %s11, 0
    %13 = vsyncpa [#allocation5], 0
    %s14 = scalar_lea.sflag [#allocation5], 1
    %15 = vsyncpa %s14, 0
    loop: start=0, step=1, limit=4
    $region2: #{tpu_custom_call.1} parent=1 // loop_pre_header
      _
    $region3: #{tpu_custom_call.1} parent=1 // loop_header
      %s17 = sphi 0, %s21
      %p18 = scmp.ge.s32.totalorder %s17, 4
      %s24 = sphi 0, %s36
      %s25 = sphi 0, %s32
      %s26 = sphi 0, %s24
      %s27 = sphi 0, %s25
      %s28 = sphi 0, %s26
      %s29 = sphi 0, %s27
      %s41 = sphi 0, %s43
      %s44 = sphi 0, %s41
      %s45 = sphi 0, %s44
      %s61 = sphi 0, %s45
      %s69 = sphi 0, %s71
      %s72 = sphi 0, %s69
      %s73 = sphi 0, %s72
      %s89 = sphi 0, %s73
      %s95 = sphi 0, %s97
      %s98 = sphi 0, %s95
      %s99 = sphi 0, %s98
      %s115 = sphi 0, %s99
    $region4: #{tpu_custom_call.1} parent=1 // loop_header_branch
      %20 = sbr.rel (%p18) target = $region8
    $region5: #{tpu_custom_call.1} parent=1 // loop_body
      %s22 = ssub.s32 %s17, 1
      %s23 = ssub.s32 %s17, 2
      %s30 = sadd.s32 1, %s25
      %p31 = scmp.ge.s32.totalorder %s30, 1
      %s32 = scalar_select %p31, 0, %s30
      %s33 = sadd.s32 1, %s24
      %s34 = scalar_select %p31, %s33, %s24
      %p35 = scmp.ge.s32.totalorder %s34, 2
      %s36 = scalar_select %p35, 0, %s34
      %s37 = ssub.s32 %s24, %s36
      %s38 = ssub.s32 %s25, %s32
      %s39 = sor.u32 %s37, %s38
      %p40 = scmp.eq.s32.totalorder %s39, 0
      %s42 = sadd.s32 %s41, 1
      %s43 = scalar_select %p40, %s41, %s42
      %p46 = pneg %p40
      %p47 = scmp.eq.s32.totalorder %s17, 1
      %p48 = por %p46, %p47
      %p49 = scmp.ne.s32.totalorder %s41, %s44
      %p50 = scmp.eq.s32.totalorder %s17, 0
      %p51 = por %p49, %p50
      %p52 = scmp.ne.s32.totalorder %s41, %s44
      %p53 = scmp.eq.s32.totalorder %s22, 1
      %p54 = por %p52, %p53
      %p55 = scmp.ne.s32.totalorder %s44, %s45
      %p56 = scmp.eq.s32.totalorder %s22, 0
      %p57 = por %p55, %p56
      %p58 = scmp.ne.s32.totalorder %s44, %s45
      %p59 = scmp.eq.s32.totalorder %s23, 1
      %p60 = por %p58, %p59
      %p62 = scmp.ne.s32.totalorder %s45, %s61
      %p63 = scmp.eq.s32.totalorder %s23, 0
      %p64 = por %p62, %p63
      %s65 = ssub.s32 %s24, %s36
      %s66 = ssub.s32 %s25, %s32
      %s67 = sor.u32 %s65, %s66
      %p68 = scmp.eq.s32.totalorder %s67, 0
      %s70 = sadd.s32 %s69, 1
      %s71 = scalar_select %p68, %s69, %s70
      %p74 = pneg %p68
      %p75 = scmp.eq.s32.totalorder %s17, 1
      %p76 = por %p74, %p75
      %p77 = scmp.ne.s32.totalorder %s69, %s72
      %p78 = scmp.eq.s32.totalorder %s17, 0
      %p79 = por %p77, %p78
      %p80 = scmp.ne.s32.totalorder %s69, %s72
      %p81 = scmp.eq.s32.totalorder %s22, 1
      %p82 = por %p80, %p81
      %p83 = scmp.ne.s32.totalorder %s72, %s73
      %p84 = scmp.eq.s32.totalorder %s22, 0
      %p85 = por %p83, %p84
      %p86 = scmp.ne.s32.totalorder %s72, %s73
      %p87 = scmp.eq.s32.totalorder %s23, 1
      %p88 = por %p86, %p87
      %p90 = scmp.ne.s32.totalorder %s73, %s89
      %p91 = scmp.eq.s32.totalorder %s23, 0
      %p92 = por %p90, %p91
      %s93 = ssub.s32 %s24, %s36
      %p94 = scmp.eq.s32.totalorder %s93, 0
      %s96 = sadd.s32 %s95, 1
      %s97 = scalar_select %p94, %s95, %s96
      %p100 = pneg %p94
      %p101 = scmp.eq.s32.totalorder %s17, 1
      %p102 = por %p100, %p101
      %p103 = scmp.ne.s32.totalorder %s95, %s98
      %p104 = scmp.eq.s32.totalorder %s17, 0
      %p105 = por %p103, %p104
      %p106 = scmp.ne.s32.totalorder %s95, %s98
      %p107 = scmp.eq.s32.totalorder %s22, 1
      %p108 = por %p106, %p107
      %p109 = scmp.ne.s32.totalorder %s98, %s99
      %p110 = scmp.eq.s32.totalorder %s22, 0
      %p111 = por %p109, %p110
      %p112 = scmp.ne.s32.totalorder %s98, %s99
      %p113 = scmp.eq.s32.totalorder %s23, 1
      %p114 = por %p112, %p113
      %p116 = scmp.ne.s32.totalorder %s99, %s115
      %p117 = scmp.eq.s32.totalorder %s23, 0
      %p118 = por %p116, %p117
      %p119 = scmp.le.s32.totalorder 1, %s17
      %p120 = scmp.lt.s32.totalorder %s17, 3
      %p121 = pnand %p119, %p120
      %p122 = pneg %p121
      // Predicated region
      $region9: #{tpu_custom_call.1} parent=5 // pred_check
        _
      $region10: #{tpu_custom_call.1} parent=5 // pred_check_branch
        %124 = sbr.rel (%p121) target = $region12
      $region11: #{tpu_custom_call.1} parent=5 // pred_region
        %s125 = ssub.s32 %s17, 1
      $region12: #{tpu_custom_call.1} parent=5 // pred_fallthru
        _
      %p126 = scmp.lt.s32.totalorder %s17, 2
      // Predicated region
      $region13: #{tpu_custom_call.1} parent=5 // pred_check
        %p127 = pneg %p126
      $region14: #{tpu_custom_call.1} parent=5 // pred_check_branch
        %129 = sbr.rel (%p127) target = $region16
      $region15: #{tpu_custom_call.1} parent=5 // pred_region
        // Predicated region
        $region17: #{tpu_custom_call.1} parent=15 // pred_check
          %p130 = pneg %p51
        $region18: #{tpu_custom_call.1} parent=15 // pred_check_branch
          %132 = sbr.rel (%p130) target = $region20
        $region19: #{tpu_custom_call.1} parent=15 // pred_region
          %s133 = sand.u32 %s41, 1
          %s134 = scalar_lea.sflag [#allocation4], %s133
          %s135 = sand.u32 %s41, 1
          %s136 = smul.addr %s135, 128
          %s137 = scalar_lea.vmem [#allocation3], %s136
          %s138 = smul.u32 16, %s25
          %s140 = ssub.s32 2048, 2048
          %141 = vsyncadd %s134, %s140
          %s142 = smul.addr %s24, 16
          %s143 = sadd.s32 %s138, %s142
          %s144 = smul.addr %s143, 128
          %s145 = scalar_lea.hbm %s0, %s144
          %s146 = sshll.u32 %s137, 4
          %s147 = int_to_ptr.vmem [resolvable:$true] %s146
          %152 = dma.hbm_to_vmem [thread:$0]  %s145, 2048, %s147, %s134, 128, 128, 8
        $region20: #{tpu_custom_call.1} parent=15 // pred_fallthru
          _
        // Predicated region
        $region21: #{tpu_custom_call.1} parent=15 // pred_check
          %p153 = pneg %p79
        $region22: #{tpu_custom_call.1} parent=15 // pred_check_branch
          %155 = sbr.rel (%p153) target = $region24
        $region23: #{tpu_custom_call.1} parent=15 // pred_region
          %s156 = sand.u32 %s69, 1
          %s157 = scalar_lea.sflag [#allocation7], %s156
          %s158 = sand.u32 %s69, 1
          %s159 = scalar_lea.vmem [#allocation6], %s158
          %s161 = ssub.s32 16, 16
          %162 = vsyncadd %s157, %s161
          %s163 = sadd.s32 %s25, %s24
          %s164 = smul.addr %s163, 16
          %s165 = scalar_lea.hbm %s1, %s164
          %s167 = sshll.u32 %s159, 4
          %s168 = int_to_ptr.vmem [resolvable:$true] %s167
          %170 = dma.hbm_to_vmem [thread:$0]  %s165, 16, %s168, %s157
        $region24: #{tpu_custom_call.1} parent=15 // pred_fallthru
          _
      $region16: #{tpu_custom_call.1} parent=5 // pred_fallthru
        _
      %p171 = scmp.le.s32.totalorder 1, %s17
      %p172 = scmp.lt.s32.totalorder %s17, 3
      %p173 = pnand %p171, %p172
      %p174 = pneg %p173
      // Predicated region
      $region25: #{tpu_custom_call.1} parent=5 // pred_check
        _
      $region26: #{tpu_custom_call.1} parent=5 // pred_check_branch
        %176 = sbr.rel (%p173) target = $region28
      $region27: #{tpu_custom_call.1} parent=5 // pred_region
        %s177 = ssub.s32 %s17, 1
        %s178 = sand.u32 %s44, 1
        %s179 = scalar_lea.sflag [#allocation4], %s178
        %s180 = sand.u32 %s44, 1
        %s181 = smul.addr %s180, 128
        %s182 = scalar_lea.vmem [#allocation3], %s181
        // Predicated region
        $region29: #{tpu_custom_call.1} parent=27 // pred_check
          %p183 = pneg %p57
        $region30: #{tpu_custom_call.1} parent=27 // pred_check_branch
          %185 = sbr.rel (%p183) target = $region32
        $region31: #{tpu_custom_call.1} parent=27 // pred_region
          %186 = dma.done %s179, 2048
        $region32: #{tpu_custom_call.1} parent=27 // pred_fallthru
          _
        %s187 = sand.u32 %s72, 1
        %s188 = scalar_lea.sflag [#allocation7], %s187
        %s189 = sand.u32 %s72, 1
        %s190 = scalar_lea.vmem [#allocation6], %s189
        // Predicated region
        $region33: #{tpu_custom_call.1} parent=27 // pred_check
          %p191 = pneg %p85
        $region34: #{tpu_custom_call.1} parent=27 // pred_check_branch
          %193 = sbr.rel (%p191) target = $region36
        $region35: #{tpu_custom_call.1} parent=27 // pred_region
          %194 = dma.done %s188, 16
        $region36: #{tpu_custom_call.1} parent=27 // pred_fallthru
          _
        %s195 = sand.u32 %s44, 1
        %s196 = scalar_lea.sflag [#allocation4], %s195
        %s197 = sand.u32 %s44, 1
        %s198 = smul.addr %s197, 128
        %s199 = scalar_lea.vmem [#allocation3], %s198
        %p200 = pneg %p57
        %p201 = pneg %p54
        %s202 = sand.u32 %s72, 1
        %s203 = scalar_lea.sflag [#allocation7], %s202
        %s204 = sand.u32 %s72, 1
        %s205 = scalar_lea.vmem [#allocation6], %s204
        %p206 = pneg %p85
        %p207 = pneg %p82
        %p208 = pneg %p111
        %p209 = pneg %p108
        %s210 = sand.u32 %s98, 1
        %s211 = scalar_lea.sflag [#allocation5], %s210
        %s212 = sand.u32 %s98, 1
        %s213 = scalar_lea.vmem [#allocation8], %s212
        %s214 = smul.u32 16, %s27
        %p215 = scmp.eq.s32.totalorder %s27, 0
        // Predicated region
        $region37: #{tpu_custom_call.1} parent=27 // pred_check
          %p216 = pneg %p215
        $region38: #{tpu_custom_call.1} parent=27 // pred_check_branch
          %218 = sbr.rel (%p216) target = $region40
        $region39: #{tpu_custom_call.1} parent=27 // pred_region
          %219 = vst [vmem:[%s213] sm:$0x1] 0.0
          %vm220 = vcmask 0
          %221 = vst.msk [vmem:[#allocation2] sm:$0x1] %vm220, 0.0
        $region40: #{tpu_custom_call.1} parent=27 // pred_fallthru
          _
        %v222 = vld [vmem:[%s182] sm:$0xff]
        %v223 = vld [vmem:[%s182 + $0x8] sm:$0xff]
        %v224 = vld [vmem:[%s182 + $0x10] sm:$0xff]
        %v225 = vld [vmem:[%s182 + $0x18] sm:$0xff]
        %v226 = vld [vmem:[%s182 + $0x20] sm:$0xff]
        %v227 = vld [vmem:[%s182 + $0x28] sm:$0xff]
        %v228 = vld [vmem:[%s182 + $0x30] sm:$0xff]
        %v229 = vld [vmem:[%s182 + $0x38] sm:$0xff]
        %v230 = vld [vmem:[%s182 + $0x40] sm:$0xff]
        %v231 = vld [vmem:[%s182 + $0x48] sm:$0xff]
        %v232 = vld [vmem:[%s182 + $0x50] sm:$0xff]
        %v233 = vld [vmem:[%s182 + $0x58] sm:$0xff]
        %v234 = vld [vmem:[%s182 + $0x60] sm:$0xff]
        %v235 = vld [vmem:[%s182 + $0x68] sm:$0xff]
        %v236 = vld [vmem:[%s182 + $0x70] sm:$0xff]
        %v237 = vld [vmem:[%s182 + $0x78] sm:$0xff]
        %v238 = vld [vmem:[%s190] sm:$0x1]
        %239 = vmatprep.subr.mxu0 0.0
        %240 = vmatpush1.msra.mxu0 %v237
        %241 = vmatprep.subr.mxu0 0.0
        %242 = vmatpush1.msra.mxu0 %v236
        %243 = vmatprep.subr.mxu0 0.0
        %244 = vmatpush1.msra.mxu0 %v235
        %245 = vmatprep.subr.mxu0 0.0
        %246 = vmatpush1.msra.mxu0 %v234
        %247 = vmatprep.subr.mxu0 0.0
        %248 = vmatpush1.msra.mxu0 %v233
        %249 = vmatprep.subr.mxu0 0.0
        %250 = vmatpush1.msra.mxu0 %v232
        %251 = vmatprep.subr.mxu0 0.0
        %252 = vmatpush1.msra.mxu0 %v231
        %253 = vmatprep.subr.mxu0 0.0
        %254 = vmatpush1.msra.mxu0 %v230
        %255 = vmatprep.subr.mxu0 0.0
        %256 = vmatpush1.msra.mxu0 %v229
        %257 = vmatprep.subr.mxu0 0.0
        %258 = vmatpush1.msra.mxu0 %v228
        %259 = vmatprep.subr.mxu0 0.0
        %260 = vmatpush1.msra.mxu0 %v227
        %261 = vmatprep.subr.mxu0 0.0
        %262 = vmatpush1.msra.mxu0 %v226
        %263 = vmatprep.subr.mxu0 0.0
        %264 = vmatpush1.msra.mxu0 %v225
        %265 = vmatprep.subr.mxu0 0.0
        %266 = vmatpush1.msra.mxu0 %v224
        %267 = vmatprep.subr.mxu0 0.0
        %268 = vmatpush1.msra.mxu0 %v223
        %269 = vmatprep.subr.mxu0 0.0
        %270 = vmatpush1.msra.mxu0 %v222
        %271 = vmatprep.subr.mxu0 0.0
        %272 = vmatpush2.msra.mxu0 0.0
        %273 = vmatprep.subr.mxu0 0.0
        %274 = vmatpush2.msra.mxu0 0.0
        %275 = vmatprep.subr.mxu0 0.0
        %276 = vmatpush2.msra.mxu0 0.0
        %277 = vmatprep.subr.mxu0 0.0
        %278 = vmatpush2.msra.mxu0 0.0
        %279 = vmatprep.subr.mxu0 0.0
        %280 = vmatpush2.msra.mxu0 0.0
        %281 = vmatprep.subr.mxu0 0.0
        %282 = vmatpush2.msra.mxu0 0.0
        %283 = vmatprep.subr.mxu0 0.0
        %284 = vmatpush2.msra.mxu0 0.0
        %285 = vmatprep.subr.mxu0 0.0
        %286 = vmatpush2.msra.mxu0 0.0
        %287 = vmatprep.subr.mxu0 0.0
        %288 = vmatpush2.msra.mxu0 0.0
        %289 = vmatprep.subr.mxu0 0.0
        %290 = vmatpush2.msra.mxu0 0.0
        %291 = vmatprep.subr.mxu0 0.0
        %292 = vmatpush2.msra.mxu0 0.0
        %293 = vmatprep.subr.mxu0 0.0
        %294 = vmatpush2.msra.mxu0 0.0
        %295 = vmatprep.subr.mxu0 0.0
        %296 = vmatpush2.msra.mxu0 0.0
        %297 = vmatprep.subr.mxu0 0.0
        %298 = vmatpush2.msra.mxu0 0.0
        %299 = vmatprep.subr.mxu0 0.0
        %300 = vmatpush2.msra.mxu0 0.0
        %301 = vmatprep.subr.mxu0 0.0
        %302 = vmatpush2.msra.mxu0 0.0
        %303 = vmatprep.mubr.f32.mxu0 0.0
        %304 = vmatmul.mubr.f32.gmra.mxu0 %v238
        %v305 = vpop.f32.mrf.mxu0
        %v306 = vadd.f32 0.0, %v305
        %v307 = vpop.f32.mrf.mxu0
        %308 = vdwg.mxu0
        %v309 = vld [vmem:[%s213] sm:$0x1]
        %v310 = vadd.f32 %v309, %v306
        %311 = vst [vmem:[%s213] sm:$0x1] %v310
        %v312 = vld [vmem:[#allocation2] sm:$0x1]
        %vm313 = vcmask 1040384
        %v314 = vsel %vm313, %v238, 0.0
        %315 = vadd.xlane.f32.xlu0 %v314
        %v316 = vpop.xlane.xlu0 %315
        %v317 = vadd.f32 %v312, %v316
        %vm318 = vcmask 0
        %319 = vst.msk [vmem:[#allocation2] sm:$0x1] %vm318, %v317
        // Predicated region
        $region41: #{tpu_custom_call.1} parent=27 // pred_check
          %p320 = pneg %p215
        $region42: #{tpu_custom_call.1} parent=27 // pred_check_branch
          %322 = sbr.rel (%p320) target = $region44
        $region43: #{tpu_custom_call.1} parent=27 // pred_region
          %v323 = vld [vmem:[#allocation2] sm:$0x1]
          %v324 = vmax.f32 %v323, 1e-06
          %v325 = vld [vmem:[%s213] sm:$0x1]
          %327 = vset.pattern.permute.xlu0 0
          %328 = vperm.xlu0 %327, %v324
          %v329 = vpop.permute.xlu0 %328
          %v331 = vlaneseq
          %v332 = vshrl.u32 %v331, 7
          %v333 = vsub.s32 0, %v332
          %v334 = vrot.slane %v329, %v333
          %v335 = vrcp.pop %v334
          %v336 = vmul.f32 %v325, %v335
          %337 = vst [vmem:[%s213] sm:$0x1] %v336
        $region44: #{tpu_custom_call.1} parent=27 // pred_fallthru
          _
        %s338 = sand.u32 %s98, 1
        %s339 = scalar_lea.sflag [#allocation5], %s338
        %s340 = sand.u32 %s98, 1
        %s341 = scalar_lea.vmem [#allocation8], %s340
        // Predicated region
        $region45: #{tpu_custom_call.1} parent=27 // pred_check
          %p342 = pneg %p108
        $region46: #{tpu_custom_call.1} parent=27 // pred_check_branch
          %344 = sbr.rel (%p342) target = $region48
        $region47: #{tpu_custom_call.1} parent=27 // pred_region
          %s346 = ssub.s32 16, 16
          %347 = vsyncadd %s339, %s346
          %s348 = smul.addr %s26, 16
          %s349 = scalar_lea.hbm %s2, %s348
          %s351 = sshll.u32 %s341, 4
          %s352 = int_to_ptr.vmem [resolvable:$true] %s351
          %354 = dma.vmem_to_hbm [thread:$0]  %s352, 16, %s349, %s339
        $region48: #{tpu_custom_call.1} parent=27 // pred_fallthru
          _
      $region28: #{tpu_custom_call.1} parent=5 // pred_fallthru
        _
      %p355 = scmp.le.s32.totalorder 2, %s17
      // Predicated region
      $region49: #{tpu_custom_call.1} parent=5 // pred_check
        %p356 = pneg %p355
      $region50: #{tpu_custom_call.1} parent=5 // pred_check_branch
        %358 = sbr.rel (%p356) target = $region52
      $region51: #{tpu_custom_call.1} parent=5 // pred_region
        %s359 = ssub.s32 %s17, 2
        // Predicated region
        $region53: #{tpu_custom_call.1} parent=51 // pred_check
          %p360 = pneg %p114
        $region54: #{tpu_custom_call.1} parent=51 // pred_check_branch
          %362 = sbr.rel (%p360) target = $region56
        $region55: #{tpu_custom_call.1} parent=51 // pred_region
          %s363 = sand.u32 %s99, 1
          %s364 = scalar_lea.sflag [#allocation5], %s363
          %s365 = sand.u32 %s99, 1
          %s366 = scalar_lea.vmem [#allocation8], %s365
          %367 = dma.done %s364, 16
        $region56: #{tpu_custom_call.1} parent=51 // pred_fallthru
          _
      $region52: #{tpu_custom_call.1} parent=5 // pred_fallthru
        _
    $region6: #{tpu_custom_call.1} parent=1 // loop_footer
      %s21 = sadd.s32 1, %s17
    $region7: #{tpu_custom_call.1} parent=1 // loop_footer_branch
      %16 = sbr.rel target = $region3
    $region8: #{tpu_custom_call.1} parent=1 // loop_exit
      _
    %368 = vsyncpa [#allocation4], 1
    %s369 = scalar_lea.sflag [#allocation4], 1
    %370 = vsyncpa %s369, 1
    %371 = vsyncpa [#allocation7], 1
    %s372 = scalar_lea.sflag [#allocation7], 1
    %373 = vsyncpa %s372, 1
    %374 = vsyncpa [#allocation5], 1
    %s375 = scalar_lea.sflag [#allocation5], 1
    %376 = vsyncpa %s375, 1

</llo_original>
